<compile_context>
chip_gen: v7x
topology: tpu7x:2x2x1
jax: 0.10.0
libtpu: 0.0.40
codegen_flags: <defaults>
</compile_context>

<pallas_src>
import functools

import jax
import jax.numpy as jnp
from jax.experimental import pallas as pl
from jax.experimental.pallas import tpu as pltpu

BN_EPS = 1e-5
NEG_BIG = -1e30          # finite stand-in for -inf (exp underflows to exactly 0 in f32)
MAX_TILE_B = 512         # upper bound on batch-rows per grid step


def _round_up(x, m):
    return (x + m - 1) // m * m


def _pick_tile_b(batch):
    """Adaptive batch tile: big enough to fill MXU rows, >=2 grid steps for moderate batches."""
    if _round_up(batch, 8) <= 8:
        return 8
    half = _round_up((batch + 1) // 2, 8)      # aim for >= 2 steps (both TCs on v7x)
    return max(8, min(MAX_TILE_B, half))


# ---------------------------------------------------------------------------
# Fused kernel: block-diag encoders -> gated attention -> masked softmax pool -> head
# ---------------------------------------------------------------------------
def fused_mil_kernel(x_ref, mbias_ref,
                     w1_ref, b1_ref, w2_ref, b2_ref,
                     wa2_ref, wh_ref, bh_ref,
                     out_ref, *, n_mod, z_dim, n_lat):
    zl = z_dim + n_lat
    w_dtype = w1_ref.dtype

    # --- all modality encoders in ONE MXU pass (block-diag weights, BN folded, Dropout=identity) ---
    h = jnp.dot(x_ref[...], w1_ref[...], preferred_element_type=jnp.float32) + b1_ref[...]
    h = jnp.maximum(h, 0.0)                                            # (TB, M*H)

    # --- second block-diag pass emits [mu_m | a_pre_m] per modality (wa1 folded into wmu) ---
    g = jnp.dot(h.astype(w_dtype), w2_ref[...],
                preferred_element_type=jnp.float32) + b2_ref[...]      # (TB, M*(Z+L))

    mbias = mbias_ref[...]                                             # (TB, M)
    wa2 = wa2_ref[...]                                                 # (1, L); 1/T folded in

    mus, scores = [], []
    for m in range(n_mod):                                             # unrolled; M small & static
        blk = g[:, m * zl:(m + 1) * zl]
        mus.append(blk[:, :z_dim])                                     # (TB, Z)
        a = jnp.tanh(blk[:, z_dim:])                                   # (TB, L)
        scores.append(jnp.sum(a * wa2, axis=-1, keepdims=True)
                      + mbias[:, m:m + 1])                             # (TB, 1)

    # --- masked softmax over modalities ---
    mx = scores[0]
    for m in range(1, n_mod):
        mx = jnp.maximum(mx, scores[m])
    es = [jnp.exp(s - mx) for s in scores]
    denom = es[0]
    for m in range(1, n_mod):
        denom = denom + es[m]
    inv = pl.reciprocal(denom, approx=True)                            # EUP slot (free-ish)

    pooled = (es[0] * inv) * mus[0]
    for m in range(1, n_mod):
        pooled = pooled + (es[m] * inv) * mus[m]                       # (TB, Z)

    # --- head (BN folded into Linear), lane-dense padded output ---
    out_ref[...] = jnp.dot(pooled.astype(wh_ref.dtype), wh_ref[...],
                           preferred_element_type=jnp.float32) + bh_ref[...]


# ---------------------------------------------------------------------------
# Wrapper: parameter folding / packing + single pallas_call
# ---------------------------------------------------------------------------
def multimodal_mil_forward(modalities, modality_mask, params, *,
                           temperature=1.0, use_bf16=False):
    enc = params['encoders']
    M = len(modalities)
    B = modalities[0].shape[0]
    Z = params['z_dim']
    n_out = params['n_out']
    H = enc[0]['w1'].shape[1]
    L = params['wa1'].shape[1]
    ZL = Z + L

    n_feats = [x.shape[1] for x in modalities]
    nf_total = sum(n_feats)
    nf_pad = _round_up(nf_total, 128)                 # lane-dense input width
    nout_pad = _round_up(n_out, 128)                  # lane-dense output width

    tile_b = _pick_tile_b(B)
    b_pad = _round_up(B, tile_b)
    w_dtype = jnp.bfloat16 if use_bf16 else jnp.float32

    # ---- pack inputs: lane-concat modalities, pad to (b_pad, nf_pad) ----
    x_cat = jnp.concatenate([x.astype(jnp.float32) for x in modalities], axis=1)
    x_packed = jnp.zeros((b_pad, nf_pad), jnp.float32).at[:B, :nf_total].set(x_cat)
    x_packed = x_packed.astype(w_dtype)

    # ---- fold eval-mode BN into encoder Linear; build block-diagonal stacked weights ----
    # w1_big: (nf_pad, M*H) block-diag; w2_big: (M*H, M*(Z+L)) block-diag with [wmu | wmu@wa1]
    wa1 = params['wa1']                               # (Z, L)
    ba1 = params['ba1'][0]                            # (L,)
    inv_t = jnp.float32(1.0 / temperature)

    w1_big = jnp.zeros((nf_pad, M * H), jnp.float32)
    b1_big = jnp.zeros((1, M * H), jnp.float32)
    w2_big = jnp.zeros((M * H, M * ZL), jnp.float32)
    b2_big = jnp.zeros((1, M * ZL), jnp.float32)

    row0 = 0
    for m, e in enumerate(enc):
        nf = e['w1'].shape[0]
        scale = e['gamma'][0] * jax.lax.rsqrt(e['rv'][0] + BN_EPS)            # (H,)
        w1f = e['w1'] * scale[None, :]
        b1f = (e['b1'][0] - e['rm'][0]) * scale + e['beta'][0]
        w1_big = w1_big.at[row0:row0 + nf, m * H:(m + 1) * H].set(w1f)
        b1_big = b1_big.at[0, m * H:(m + 1) * H].set(b1f)
        row0 += nf

        wmu = e['wmu']                                # (H, Z)
        bmu = e['bmu'][0]                             # (Z,)
        wmu_a = wmu @ wa1                             # (H, L)  -- wa1 folded into fc_mu
        bmu_a = bmu @ wa1 + ba1                       # (L,)
        w2_big = w2_big.at[m * H:(m + 1) * H, m * ZL:m * ZL + Z].set(wmu)
        w2_big = w2_big.at[m * H:(m + 1) * H, m * ZL + Z:(m + 1) * ZL].set(wmu_a)
        b2_big = b2_big.at[0, m * ZL:m * ZL + Z].set(bmu)
        b2_big = b2_big.at[0, m * ZL + Z:(m + 1) * ZL].set(bmu_a)

    # ---- attention L->1 projection: fold 1/T into wa2; ba2/T goes into the mask bias ----
    wa2_row = (params['wa2'][:, 0] * inv_t)[None, :]                          # (1, L)
    ba2 = params['ba2'][0, 0] * inv_t

    mask_bias = jnp.zeros((b_pad, M), jnp.float32)
    mask_bias = mask_bias.at[:B, :].set(
        jnp.where(modality_mask, ba2, jnp.float32(NEG_BIG)))
    # padded batch rows keep bias 0.0 -> softmax well-defined; results are sliced off.

    # ---- fold head BN into the head Linear; lane-pad the output dim ----
    scale_h = params['head_gamma'][0] * jax.lax.rsqrt(params['head_rv'][0] + BN_EPS)  # (Z,)
    wh_f = params['wh'] * scale_h[:, None]
    bh_f = params['bh'][0] + (params['head_beta'][0]
                              - params['head_rm'][0] * scale_h) @ params['wh']
    wh_pad = jnp.zeros((Z, nout_pad), jnp.float32).at[:, :n_out].set(wh_f)
    bh_pad = jnp.zeros((1, nout_pad), jnp.float32).at[0, :n_out].set(bh_f)

    # cast matmul operands last (all folding done in f32); biases stay f32 (added post-MXU)
    w1_big = w1_big.astype(w_dtype)
    w2_big = w2_big.astype(w_dtype)
    wh_pad = wh_pad.astype(w_dtype)

    def full_spec(*shape):
        return pl.BlockSpec(shape, lambda b, _n=len(shape): (0,) * _n)

    out = pl.pallas_call(
        functools.partial(fused_mil_kernel, n_mod=M, z_dim=Z, n_lat=L),
        out_shape=jax.ShapeDtypeStruct((b_pad, nout_pad), jnp.float32),
        grid_spec=pltpu.PrefetchScalarGridSpec(
            num_scalar_prefetch=0,
            grid=(b_pad // tile_b,),
            in_specs=[
                pl.BlockSpec((tile_b, nf_pad), lambda b: (b, 0)),    # lane-concat inputs
                pl.BlockSpec((tile_b, M), lambda b: (b, 0)),         # additive mask bias
                full_spec(nf_pad, M * H),                            # block-diag w1 (BN folded)
                full_spec(1, M * H),                                 # b1
                full_spec(M * H, M * ZL),                            # block-diag [wmu | wmu@wa1]
                full_spec(1, M * ZL),                                # [bmu | bmu@wa1 + ba1]
                full_spec(1, L),                                     # wa2 row (/T)
                full_spec(Z, nout_pad),                              # head wh (BN folded, padded)
                full_spec(1, nout_pad),                              # head bh
            ],
            out_specs=pl.BlockSpec((tile_b, nout_pad), lambda b: (b, 0)),
        ),
        compiler_params=pltpu.CompilerParams(dimension_semantics=("parallel",)),
    )(x_packed, mask_bias, w1_big, b1_big, w2_big, b2_big,
      wa2_row, wh_pad, bh_pad)

    return out[:B, :n_out]


# ---------------------------------------------------------------------------
# Pure-JAX reference (unfolded, mirrors the PyTorch eval-mode forward)
# ---------------------------------------------------------------------------
def reference_forward(modalities, modality_mask, params, *, temperature=1.0):
    mus = []
    for i, x in enumerate(modalities):
        e = params['encoders'][i]
        h = x @ e['w1'] + e['b1']
        h = (h - e['rm']) * jax.lax.rsqrt(e['rv'] + BN_EPS) * e['gamma'] + e['beta']
        h = jnp.maximum(h, 0.0)
        mus.append(h @ e['wmu'] + e['bmu'])
    emb = jnp.stack(mus, axis=1)
    a = jnp.tanh(jnp.einsum('bmz,zl->bml', emb, params['wa1']) + params['ba1'])
    scores = (jnp.einsum('bml,lo->bmo', a, params['wa2']) + params['ba2'])[:, :, 0]
    masked = jnp.where(modality_mask, scores, -jnp.inf) / temperature
    att = jax.nn.softmax(masked, axis=1)
    pooled = jnp.sum(att[:, :, None] * emb, axis=1)
    hn = ((pooled - params['head_rm']) * jax.lax.rsqrt(params['head_rv'] + BN_EPS)
          * params['head_gamma'] + params['head_beta'])
    return hn @ params['wh'] + params['bh']


# ---------------------------------------------------------------------------
# Deterministic parameter construction
# ---------------------------------------------------------------------------
def make_params(key, n_feats, n_out, z_dim, hidden_dim):
    def lin(k, fan_in, fan_out, scale=0.05):
        k1, k2 = jax.random.split(k)
        w = jax.random.normal(k1, (fan_in, fan_out), jnp.float32) * scale
        b = jax.random.normal(k2, (1, fan_out), jnp.float32) * scale
        return w, b

    keys = jax.random.split(key, 4 + len(n_feats))
    encoders = []
    for i, nf in enumerate(n_feats):
        k1, k2 = jax.random.split(keys[i])
        w1, b1 = lin(k1, nf, hidden_dim)
        wmu, bmu = lin(k2, hidden_dim, z_dim)
        encoders.append(dict(
            w1=w1, b1=b1,
            gamma=jnp.ones((1, hidden_dim), jnp.float32) * 1.1,
            beta=jnp.ones((1, hidden_dim), jnp.float32) * 0.05,
            rm=jnp.ones((1, hidden_dim), jnp.float32) * 0.02,
            rv=jnp.ones((1, hidden_dim), jnp.float32) * 0.9,
            wmu=wmu, bmu=bmu,
        ))

    n_latent = (z_dim + 1) // 2
    wa1, ba1 = lin(keys[len(n_feats)], z_dim, n_latent, scale=0.5)
    wa2, ba2 = lin(keys[len(n_feats) + 1], n_latent, 1, scale=0.5)
    wh, bh = lin(keys[len(n_feats) + 2], z_dim, n_out)

    return dict(
        z_dim=z_dim, n_out=n_out, encoders=encoders,
        wa1=wa1, ba1=ba1, wa2=wa2, ba2=ba2,
        head_gamma=jnp.ones((1, z_dim), jnp.float32) * 0.95,
        head_beta=jnp.ones((1, z_dim), jnp.float32) * 0.1,
        head_rm=jnp.ones((1, z_dim), jnp.float32) * 0.01,
        head_rv=jnp.ones((1, z_dim), jnp.float32) * 1.05,
        wh=wh, bh=bh,
    )


if __name__ == "__main__":
    key = jax.random.PRNGKey(0)

    n_feats = [16, 24, 8]     # 3 modalities
    n_out = 3
    z_dim = 32
    hidden_dim = 32

    kp, k_small, k_big, k_mask = jax.random.split(key, 4)
    params = make_params(kp, n_feats, n_out, z_dim, hidden_dim)

    # ---- test 1: small batch, f32, single grid step ----
    B = 4
    ks = jax.random.split(k_small, len(n_feats))
    modalities = [jax.random.normal(ks[i], (B, nf), jnp.float32)
                  for i, nf in enumerate(n_feats)]
    modality_mask = jnp.array([[True,  True,  True],
                               [True,  False, True],
                               [False, True,  False],
                               [True,  True,  False]], dtype=bool)

    preds = multimodal_mil_forward(modalities, modality_mask, params, temperature=1.0)
    preds = jax.block_until_ready(preds)
    ref = reference_forward(modalities, modality_mask, params, temperature=1.0)
    assert preds.shape == (B, n_out)
    assert jnp.allclose(preds, ref, atol=2e-4, rtol=1e-3), (preds, ref)

    # ---- test 2: larger batch -> multi-step grid (both TCs on v7x), f32 and bf16 paths ----
    B2 = 300
    kb = jax.random.split(k_big, len(n_feats))
    modalities2 = [jax.random.normal(kb[i], (B2, nf), jnp.float32)
                   for i, nf in enumerate(n_feats)]
    mask2 = jax.random.bernoulli(k_mask, 0.7, (B2, len(n_feats)))
    mask2 = mask2.at[:, 0].set(jnp.logical_or(mask2[:, 0], ~jnp.any(mask2, axis=1)))

    preds2 = jax.block_until_ready(
        multimodal_mil_forward(modalities2, mask2, params, temperature=2.0))
    ref2 = reference_forward(modalities2, mask2, params, temperature=2.0)
    assert preds2.shape == (B2, n_out)
    assert jnp.allclose(preds2, ref2, atol=2e-4, rtol=1e-3), "f32 multi-tile mismatch"

    preds2_bf16 = jax.block_until_ready(
        multimodal_mil_forward(modalities2, mask2, params, temperature=2.0, use_bf16=True))
    assert jnp.allclose(preds2_bf16, ref2, atol=2e-2, rtol=5e-2), "bf16 path mismatch"

    print("KERNEL_OK")
</pallas_src>

<mosaic_0001>
module attributes {stable_mosaic.version = 11 : i64} {
  func.func @fused_mil_kernel(%arg0: i32, %arg1: memref<8x128xf32, #tpu.memory_space<vmem>>, %arg2: memref<8x3xf32, #tpu.memory_space<vmem>>, %arg3: memref<128x96xf32, #tpu.memory_space<vmem>>, %arg4: memref<1x96xf32, #tpu.memory_space<vmem>>, %arg5: memref<96x144xf32, #tpu.memory_space<vmem>>, %arg6: memref<1x144xf32, #tpu.memory_space<vmem>>, %arg7: memref<1x16xf32, #tpu.memory_space<vmem>>, %arg8: memref<32x128xf32, #tpu.memory_space<vmem>>, %arg9: memref<1x128xf32, #tpu.memory_space<vmem>>, %arg10: memref<8x128xf32, #tpu.memory_space<vmem>>) attributes {dimension_semantics = [#tpu.dimension_semantics<parallel>], iteration_bounds = array<i64: 1>, scalar_prefetch = 0 : i64, scratch_operands = 0 : i64, tpu.core_type = #tpu.core_type<tc>, window_params = [{transform_indices = @transform_0, window_bounds = array<i64: 8, 128>}, {transform_indices = @transform_1, window_bounds = array<i64: 8, 3>}, {pipeline_mode = #tpu.pipeline_mode<synchronous>, transform_indices = @transform_2, window_bounds = array<i64: 128, 96>}, {pipeline_mode = #tpu.pipeline_mode<synchronous>, transform_indices = @transform_3, window_bounds = array<i64: 1, 96>}, {pipeline_mode = #tpu.pipeline_mode<synchronous>, transform_indices = @transform_4, window_bounds = array<i64: 96, 144>}, {pipeline_mode = #tpu.pipeline_mode<synchronous>, transform_indices = @transform_5, window_bounds = array<i64: 1, 144>}, {pipeline_mode = #tpu.pipeline_mode<synchronous>, transform_indices = @transform_6, window_bounds = array<i64: 1, 16>}, {pipeline_mode = #tpu.pipeline_mode<synchronous>, transform_indices = @transform_7, window_bounds = array<i64: 32, 128>}, {pipeline_mode = #tpu.pipeline_mode<synchronous>, transform_indices = @transform_8, window_bounds = array<i64: 1, 128>}, {transform_indices = @transform_9, window_bounds = array<i64: 8, 128>}]} {
    %c0 = arith.constant 0 : index
    %c0_0 = arith.constant 0 : index
    %0 = vector.load %arg1[%c0, %c0_0] : memref<8x128xf32, #tpu.memory_space<vmem>>, vector<8x128xf32>
    %c0_1 = arith.constant 0 : index
    %c0_2 = arith.constant 0 : index
    %1 = vector.load %arg3[%c0_1, %c0_2] : memref<128x96xf32, #tpu.memory_space<vmem>>, vector<128x96xf32>
    %cst = arith.constant dense<0.000000e+00> : vector<8x96xf32>
    %2 = tpu.matmul %0, %1, %cst {dimension_numbers = #tpu.dot_dimension_numbers<[1], [0], [0], [1], [0, 0, 1, 1], [], []>} : vector<8x128xf32>, vector<128x96xf32>, vector<8x96xf32> -> vector<8x96xf32>
    %c0_3 = arith.constant 0 : index
    %c0_4 = arith.constant 0 : index
    %3 = vector.load %arg4[%c0_3, %c0_4] : memref<1x96xf32, #tpu.memory_space<vmem>>, vector<1x96xf32>
    %4 = vector.broadcast %3 : vector<1x96xf32> to vector<8x96xf32>
    %5 = arith.addf %2, %4 : vector<8x96xf32>
    %cst_5 = arith.constant 0.000000e+00 : f32
    %6 = vector.broadcast %cst_5 : f32 to vector<8x96xf32>
    %7 = arith.maximumf %5, %6 : vector<8x96xf32>
    %c0_6 = arith.constant 0 : index
    %c0_7 = arith.constant 0 : index
    %8 = vector.load %arg5[%c0_6, %c0_7] : memref<96x144xf32, #tpu.memory_space<vmem>>, vector<96x144xf32>
    %cst_8 = arith.constant dense<0.000000e+00> : vector<8x144xf32>
    %9 = tpu.matmul %7, %8, %cst_8 {dimension_numbers = #tpu.dot_dimension_numbers<[1], [0], [0], [1], [0, 0, 1, 1], [], []>} : vector<8x96xf32>, vector<96x144xf32>, vector<8x144xf32> -> vector<8x144xf32>
    %c0_9 = arith.constant 0 : index
    %c0_10 = arith.constant 0 : index
    %10 = vector.load %arg6[%c0_9, %c0_10] : memref<1x144xf32, #tpu.memory_space<vmem>>, vector<1x144xf32>
    %11 = vector.broadcast %10 : vector<1x144xf32> to vector<8x144xf32>
    %12 = arith.addf %9, %11 : vector<8x144xf32>
    %c0_11 = arith.constant 0 : index
    %c0_12 = arith.constant 0 : index
    %13 = vector.load %arg2[%c0_11, %c0_12] : memref<8x3xf32, #tpu.memory_space<vmem>>, vector<8x3xf32>
    %c0_13 = arith.constant 0 : index
    %c0_14 = arith.constant 0 : index
    %14 = vector.load %arg7[%c0_13, %c0_14] : memref<1x16xf32, #tpu.memory_space<vmem>>, vector<1x16xf32>
    %15 = vector.extract_strided_slice %12 {offsets = [0, 0], sizes = [8, 48], strides = [1, 1]} : vector<8x144xf32> to vector<8x48xf32>
    %16 = vector.extract_strided_slice %15 {offsets = [0, 0], sizes = [8, 32], strides = [1, 1]} : vector<8x48xf32> to vector<8x32xf32>
    %17 = vector.extract_strided_slice %15 {offsets = [0, 32], sizes = [8, 16], strides = [1, 1]} : vector<8x48xf32> to vector<8x16xf32>
    %18 = math.tanh %17 : vector<8x16xf32>
    %19 = vector.broadcast %14 : vector<1x16xf32> to vector<8x16xf32>
    %20 = arith.mulf %18, %19 : vector<8x16xf32>
    %cst_15 = arith.constant dense<0.000000e+00> : vector<8xf32>
    %21 = vector.multi_reduction <add>, %20, %cst_15 [1] : vector<8x16xf32> to vector<8xf32>
    %22 = vector.shape_cast %21 : vector<8xf32> to vector<8x1xf32>
    %23 = vector.extract_strided_slice %13 {offsets = [0, 0], sizes = [8, 1], strides = [1, 1]} : vector<8x3xf32> to vector<8x1xf32>
    %24 = arith.addf %22, %23 : vector<8x1xf32>
    %25 = vector.extract_strided_slice %12 {offsets = [0, 48], sizes = [8, 48], strides = [1, 1]} : vector<8x144xf32> to vector<8x48xf32>
    %26 = vector.extract_strided_slice %25 {offsets = [0, 0], sizes = [8, 32], strides = [1, 1]} : vector<8x48xf32> to vector<8x32xf32>
    %27 = vector.extract_strided_slice %25 {offsets = [0, 32], sizes = [8, 16], strides = [1, 1]} : vector<8x48xf32> to vector<8x16xf32>
    %28 = math.tanh %27 : vector<8x16xf32>
    %29 = vector.broadcast %14 : vector<1x16xf32> to vector<8x16xf32>
    %30 = arith.mulf %28, %29 : vector<8x16xf32>
    %cst_16 = arith.constant dense<0.000000e+00> : vector<8xf32>
    %31 = vector.multi_reduction <add>, %30, %cst_16 [1] : vector<8x16xf32> to vector<8xf32>
    %32 = vector.shape_cast %31 : vector<8xf32> to vector<8x1xf32>
    %33 = vector.extract_strided_slice %13 {offsets = [0, 1], sizes = [8, 1], strides = [1, 1]} : vector<8x3xf32> to vector<8x1xf32>
    %34 = arith.addf %32, %33 : vector<8x1xf32>
    %35 = vector.extract_strided_slice %12 {offsets = [0, 96], sizes = [8, 48], strides = [1, 1]} : vector<8x144xf32> to vector<8x48xf32>
    %36 = vector.extract_strided_slice %35 {offsets = [0, 0], sizes = [8, 32], strides = [1, 1]} : vector<8x48xf32> to vector<8x32xf32>
    %37 = vector.extract_strided_slice %35 {offsets = [0, 32], sizes = [8, 16], strides = [1, 1]} : vector<8x48xf32> to vector<8x16xf32>
    %38 = math.tanh %37 : vector<8x16xf32>
    %39 = vector.broadcast %14 : vector<1x16xf32> to vector<8x16xf32>
    %40 = arith.mulf %38, %39 : vector<8x16xf32>
    %cst_17 = arith.constant dense<0.000000e+00> : vector<8xf32>
    %41 = vector.multi_reduction <add>, %40, %cst_17 [1] : vector<8x16xf32> to vector<8xf32>
    %42 = vector.shape_cast %41 : vector<8xf32> to vector<8x1xf32>
    %43 = vector.extract_strided_slice %13 {offsets = [0, 2], sizes = [8, 1], strides = [1, 1]} : vector<8x3xf32> to vector<8x1xf32>
    %44 = arith.addf %42, %43 : vector<8x1xf32>
    %45 = arith.maximumf %24, %34 : vector<8x1xf32>
    %46 = arith.maximumf %45, %44 : vector<8x1xf32>
    %47 = arith.subf %24, %46 : vector<8x1xf32>
    %48 = math.exp %47 : vector<8x1xf32>
    %49 = arith.subf %34, %46 : vector<8x1xf32>
    %50 = math.exp %49 : vector<8x1xf32>
    %51 = arith.subf %44, %46 : vector<8x1xf32>
    %52 = math.exp %51 : vector<8x1xf32>
    %53 = arith.addf %48, %50 : vector<8x1xf32>
    %54 = arith.addf %53, %52 : vector<8x1xf32>
    %55 = tpu.reciprocal %54 {approx = true} : vector<8x1xf32> -> vector<8x1xf32>
    %56 = arith.mulf %48, %55 : vector<8x1xf32>
    %57 = vector.broadcast %56 : vector<8x1xf32> to vector<8x32xf32>
    %58 = arith.mulf %57, %16 : vector<8x32xf32>
    %59 = arith.mulf %50, %55 : vector<8x1xf32>
    %60 = vector.broadcast %59 : vector<8x1xf32> to vector<8x32xf32>
    %61 = arith.mulf %60, %26 : vector<8x32xf32>
    %62 = arith.addf %58, %61 : vector<8x32xf32>
    %63 = arith.mulf %52, %55 : vector<8x1xf32>
    %64 = vector.broadcast %63 : vector<8x1xf32> to vector<8x32xf32>
    %65 = arith.mulf %64, %36 : vector<8x32xf32>
    %66 = arith.addf %62, %65 : vector<8x32xf32>
    %c0_18 = arith.constant 0 : index
    %c0_19 = arith.constant 0 : index
    %67 = vector.load %arg8[%c0_18, %c0_19] : memref<32x128xf32, #tpu.memory_space<vmem>>, vector<32x128xf32>
    %cst_20 = arith.constant dense<0.000000e+00> : vector<8x128xf32>
    %68 = tpu.matmul %66, %67, %cst_20 {dimension_numbers = #tpu.dot_dimension_numbers<[1], [0], [0], [1], [0, 0, 1, 1], [], []>} : vector<8x32xf32>, vector<32x128xf32>, vector<8x128xf32> -> vector<8x128xf32>
    %c0_21 = arith.constant 0 : index
    %c0_22 = arith.constant 0 : index
    %69 = vector.load %arg9[%c0_21, %c0_22] : memref<1x128xf32, #tpu.memory_space<vmem>>, vector<1x128xf32>
    %70 = vector.broadcast %69 : vector<1x128xf32> to vector<8x128xf32>
    %71 = arith.addf %68, %70 : vector<8x128xf32>
    %c0_23 = arith.constant 0 : index
    %c0_24 = arith.constant 0 : index
    %72 = vector.load %arg10[%c0_23, %c0_24] : memref<8x128xf32, #tpu.memory_space<vmem>>, vector<8x128xf32>
    tpu.vector_store %arg10[%c0_23, %c0_24], %71 {strides = array<i32>} : memref<8x128xf32, #tpu.memory_space<vmem>>, vector<8x128xf32>,
    return
  }
  func.func @transform_0(%arg0: i32) -> (i32, i32) {
    %c0_i32 = arith.constant 0 : i32
    %c0_i32_0 = arith.constant 0 : i32
    return %arg0, %c0_i32 : i32, i32
  }
  func.func @transform_1(%arg0: i32) -> (i32, i32) {
    %c0_i32 = arith.constant 0 : i32
    %c0_i32_0 = arith.constant 0 : i32
    return %arg0, %c0_i32 : i32, i32
  }
  func.func @transform_2(%arg0: i32) -> (i32, i32) {
    %c0_i32 = arith.constant 0 : i32
    %c0_i32_0 = arith.constant 0 : i32
    %c0_i32_1 = arith.constant 0 : i32
    return %c0_i32, %c0_i32_0 : i32, i32
  }
  func.func @transform_3(%arg0: i32) -> (i32, i32) {
    %c0_i32 = arith.constant 0 : i32
    %c0_i32_0 = arith.constant 0 : i32
    %c0_i32_1 = arith.constant 0 : i32
    return %c0_i32, %c0_i32_0 : i32, i32
  }
  func.func @transform_4(%arg0: i32) -> (i32, i32) {
    %c0_i32 = arith.constant 0 : i32
    %c0_i32_0 = arith.constant 0 : i32
    %c0_i32_1 = arith.constant 0 : i32
    return %c0_i32, %c0_i32_0 : i32, i32
  }
  func.func @transform_5(%arg0: i32) -> (i32, i32) {
    %c0_i32 = arith.constant 0 : i32
    %c0_i32_0 = arith.constant 0 : i32
    %c0_i32_1 = arith.constant 0 : i32
    return %c0_i32, %c0_i32_0 : i32, i32
  }
  func.func @transform_6(%arg0: i32) -> (i32, i32) {
    %c0_i32 = arith.constant 0 : i32
    %c0_i32_0 = arith.constant 0 : i32
    %c0_i32_1 = arith.constant 0 : i32
    return %c0_i32, %c0_i32_0 : i32, i32
  }
  func.func @transform_7(%arg0: i32) -> (i32, i32) {
    %c0_i32 = arith.constant 0 : i32
    %c0_i32_0 = arith.constant 0 : i32
    %c0_i32_1 = arith.constant 0 : i32
    return %c0_i32, %c0_i32_0 : i32, i32
  }
  func.func @transform_8(%arg0: i32) -> (i32, i32) {
    %c0_i32 = arith.constant 0 : i32
    %c0_i32_0 = arith.constant 0 : i32
    %c0_i32_1 = arith.constant 0 : i32
    return %c0_i32, %c0_i32_0 : i32, i32
  }
  func.func @transform_9(%arg0: i32) -> (i32, i32) {
    %c0_i32 = arith.constant 0 : i32
    %c0_i32_0 = arith.constant 0 : i32
    return %arg0, %c0_i32 : i32, i32
  }
}

</mosaic_0001>

<llo_original>
// kernel: tpu_custom_call.1
$region0: #{tpu_custom_call.1}
  #allocation0 [shape = 'u32[]', space=smem, size = 0x4, offset = 0x4, fixed_abs, tag = 'smem constant byte address 0x4 - core index']
  #allocation1 [shape = 'u32[144,128]{1,0:T(1,128)}', space=vmem, size = 0x12000, scoped, tag = 'internal scratch']
  %s0 = inlined_call_operand.vmem [shape: f32[8,128], index: 0, kind: input, shape index: {}]
  %s1 = inlined_call_operand.vmem [shape: f32[8,3], index: 1, kind: input, shape index: {}]
  %s2 = inlined_call_operand.vmem [shape: f32[128,96], index: 2, kind: input, shape index: {}]
  %s3 = inlined_call_operand.vmem [shape: f32[1,96], index: 3, kind: input, shape index: {}]
  %s4 = inlined_call_operand.vmem [shape: f32[96,144], index: 4, kind: input, shape index: {}]
  %s5 = inlined_call_operand.vmem [shape: f32[1,144], index: 5, kind: input, shape index: {}]
  %s6 = inlined_call_operand.vmem [shape: f32[1,16], index: 6, kind: input, shape index: {}]
  %s7 = inlined_call_operand.vmem [shape: f32[32,128], index: 7, kind: input, shape index: {}]
  %s8 = inlined_call_operand.vmem [shape: f32[1,128], index: 8, kind: input, shape index: {}]
  %s9 = inlined_call_operand.hbm [shape: f32[8,128], index: 9, kind: output, shape index: {}]
  %s10 = sld [smem:[#allocation0]]
  $region46: #{tpu_custom_call.1} parent=0
    _
  %s12 = ssub.s32 1, %s10
  %s13 = scalar_select 0, %s12, %s10
  $region1: #{tpu_custom_call.1} parent=0
    #allocation2 [shape = 'u8[4096]{0}', space=vmem, size = 0x1000, scoped, tag = 'output window, operand 0, single buffered']
    #allocation3 [shape = 's32[1]{0}', space=sflag, size = 0x4, scoped, tag = 'scoped memory for tpu_custom_call.1']
    %14 = vsyncpa [#allocation3], 0
    // Predicated region
    $region2: #{tpu_custom_call.1} parent=1 // pred_check
      _
    $region3: #{tpu_custom_call.1} parent=1 // pred_check_branch
      %16 = sbr.rel (0) target = $region5
    $region4: #{tpu_custom_call.1} parent=1 // pred_region
      _
    $region5: #{tpu_custom_call.1} parent=1 // pred_fallthru
      _
    // Predicated region
    $region6: #{tpu_custom_call.1} parent=1 // pred_check
      _
    $region7: #{tpu_custom_call.1} parent=1 // pred_check_branch
      %18 = sbr.rel (0) target = $region9
    $region8: #{tpu_custom_call.1} parent=1 // pred_region
      _
    $region9: #{tpu_custom_call.1} parent=1 // pred_fallthru
      _
    // Predicated region
    $region10: #{tpu_custom_call.1} parent=1 // pred_check
      _
    $region11: #{tpu_custom_call.1} parent=1 // pred_check_branch
      %20 = sbr.rel (0) target = $region13
    $region12: #{tpu_custom_call.1} parent=1 // pred_region
      _
    $region13: #{tpu_custom_call.1} parent=1 // pred_fallthru
      _
    // Predicated region
    $region14: #{tpu_custom_call.1} parent=1 // pred_check
      _
    $region15: #{tpu_custom_call.1} parent=1 // pred_check_branch
      %22 = sbr.rel (0) target = $region17
    $region16: #{tpu_custom_call.1} parent=1 // pred_region
      _
    $region17: #{tpu_custom_call.1} parent=1 // pred_fallthru
      _
    // Predicated region
    $region18: #{tpu_custom_call.1} parent=1 // pred_check
      _
    $region19: #{tpu_custom_call.1} parent=1 // pred_check_branch
      %24 = sbr.rel (0) target = $region21
    $region20: #{tpu_custom_call.1} parent=1 // pred_region
      _
    $region21: #{tpu_custom_call.1} parent=1 // pred_fallthru
      _
    // Predicated region
    $region22: #{tpu_custom_call.1} parent=1 // pred_check
      _
    $region23: #{tpu_custom_call.1} parent=1 // pred_check_branch
      %26 = sbr.rel (0) target = $region25
    $region24: #{tpu_custom_call.1} parent=1 // pred_region
      _
    $region25: #{tpu_custom_call.1} parent=1 // pred_fallthru
      _
    // Predicated region
    $region26: #{tpu_custom_call.1} parent=1 // pred_check
      _
    $region27: #{tpu_custom_call.1} parent=1 // pred_check_branch
      %28 = sbr.rel (0) target = $region29
    $region28: #{tpu_custom_call.1} parent=1 // pred_region
      _
    $region29: #{tpu_custom_call.1} parent=1 // pred_fallthru
      _
    // Predicated region
    $region30: #{tpu_custom_call.1} parent=1 // pred_check
      _
    $region31: #{tpu_custom_call.1} parent=1 // pred_check_branch
      %30 = sbr.rel (0) target = $region33
    $region32: #{tpu_custom_call.1} parent=1 // pred_region
      _
    $region33: #{tpu_custom_call.1} parent=1 // pred_fallthru
      _
    // Predicated region
    $region34: #{tpu_custom_call.1} parent=1 // pred_check
      _
    $region35: #{tpu_custom_call.1} parent=1 // pred_check_branch
      %32 = sbr.rel (0) target = $region37
    $region36: #{tpu_custom_call.1} parent=1 // pred_region
      _
    $region37: #{tpu_custom_call.1} parent=1 // pred_fallthru
      _
    %v33 = vld [vmem:[%s0] sm:$0xff]
    %v34 = vld [vmem:[%s2] sm:$0xff]
    %v35 = vld [vmem:[%s2 + $0x8] sm:$0xff]
    %v36 = vld [vmem:[%s2 + $0x10] sm:$0xff]
    %v37 = vld [vmem:[%s2 + $0x18] sm:$0xff]
    %v38 = vld [vmem:[%s2 + $0x20] sm:$0xff]
    %v39 = vld [vmem:[%s2 + $0x28] sm:$0xff]
    %v40 = vld [vmem:[%s2 + $0x30] sm:$0xff]
    %v41 = vld [vmem:[%s2 + $0x38] sm:$0xff]
    %v42 = vld [vmem:[%s2 + $0x40] sm:$0xff]
    %v43 = vld [vmem:[%s2 + $0x48] sm:$0xff]
    %v44 = vld [vmem:[%s2 + $0x50] sm:$0xff]
    %v45 = vld [vmem:[%s2 + $0x58] sm:$0xff]
    %v46 = vld [vmem:[%s2 + $0x60] sm:$0xff]
    %v47 = vld [vmem:[%s2 + $0x68] sm:$0xff]
    %v48 = vld [vmem:[%s2 + $0x70] sm:$0xff]
    %v49 = vld [vmem:[%s2 + $0x78] sm:$0xff]
    %v50 = vld [vmem:[%s3] sm:$0x1]
    %v52 = vlaneseq
    %v53 = vshrl.u32 %v52, 7
    %v54 = vsub.s32 0, %v53
    %v55 = vrot.slane %v50, %v54
    %57 = vmatprep.subr.mxu0 0.0
    %58 = vmatpush1.msra.mxu0 %v34
    %59 = vmatprep.subr.mxu0 0.0
    %60 = vmatpush1.msra.mxu0 %v35
    %61 = vmatprep.subr.mxu0 0.0
    %62 = vmatpush1.msra.mxu0 %v36
    %63 = vmatprep.subr.mxu0 0.0
    %64 = vmatpush1.msra.mxu0 %v37
    %65 = vmatprep.subr.mxu0 0.0
    %66 = vmatpush1.msra.mxu0 %v38
    %67 = vmatprep.subr.mxu0 0.0
    %68 = vmatpush1.msra.mxu0 %v39
    %69 = vmatprep.subr.mxu0 0.0
    %70 = vmatpush1.msra.mxu0 %v40
    %71 = vmatprep.subr.mxu0 0.0
    %72 = vmatpush1.msra.mxu0 %v41
    %73 = vmatprep.subr.mxu0 0.0
    %74 = vmatpush1.msra.mxu0 %v42
    %75 = vmatprep.subr.mxu0 0.0
    %76 = vmatpush1.msra.mxu0 %v43
    %77 = vmatprep.subr.mxu0 0.0
    %78 = vmatpush1.msra.mxu0 %v44
    %79 = vmatprep.subr.mxu0 0.0
    %80 = vmatpush1.msra.mxu0 %v45
    %81 = vmatprep.subr.mxu0 0.0
    %82 = vmatpush1.msra.mxu0 %v46
    %83 = vmatprep.subr.mxu0 0.0
    %84 = vmatpush1.msra.mxu0 %v47
    %85 = vmatprep.subr.mxu0 0.0
    %86 = vmatpush1.msra.mxu0 %v48
    %87 = vmatprep.subr.mxu0 0.0
    %88 = vmatpush1.msra.mxu0 %v49
    %89 = vmatprep.subr.mxu0 0.0
    %90 = vmatpush1.msra.mxu0 0.0
    %91 = vmatprep.subr.mxu0 0.0
    %92 = vmatpush1.msra.mxu0 0.0
    %93 = vmatprep.subr.mxu0 0.0
    %94 = vmatpush1.msra.mxu0 0.0
    %95 = vmatprep.subr.mxu0 0.0
    %96 = vmatpush1.msra.mxu0 0.0
    %97 = vmatprep.subr.mxu0 0.0
    %98 = vmatpush1.msra.mxu0 0.0
    %99 = vmatprep.subr.mxu0 0.0
    %100 = vmatpush1.msra.mxu0 0.0
    %101 = vmatprep.subr.mxu0 0.0
    %102 = vmatpush1.msra.mxu0 0.0
    %103 = vmatprep.subr.mxu0 0.0
    %104 = vmatpush1.msra.mxu0 0.0
    %105 = vmatprep.subr.mxu0 0.0
    %106 = vmatpush1.msra.mxu0 0.0
    %107 = vmatprep.subr.mxu0 0.0
    %108 = vmatpush1.msra.mxu0 0.0
    %109 = vmatprep.subr.mxu0 0.0
    %110 = vmatpush1.msra.mxu0 0.0
    %111 = vmatprep.subr.mxu0 0.0
    %112 = vmatpush1.msra.mxu0 0.0
    %113 = vmatprep.subr.mxu0 0.0
    %114 = vmatpush1.msra.mxu0 0.0
    %115 = vmatprep.subr.mxu0 0.0
    %116 = vmatpush1.msra.mxu0 0.0
    %117 = vmatprep.subr.mxu0 0.0
    %118 = vmatpush1.msra.mxu0 0.0
    %119 = vmatprep.subr.mxu0 0.0
    %120 = vmatpush1.msra.mxu0 0.0
    %121 = vmatprep.mubr.f32.mxu0 0.0
    %122 = vmatmul.mubr.f32.gmra.mrb[0].mxu0 %v33
    %v123 = vpop.f32.mrb[0].mxu0
    %v124 = vadd.f32 %v55, %v123
    %v125 = vpop.f32.mrb[0].mxu0
    %126 = vdwg.mxu0
    %v127 = vmax.f32 %v124, 0.0
    %v128 = vld [vmem:[%s4] sm:$0xff]
    %v129 = vld [vmem:[%s4 + $0x8] sm:$0xff]
    %v130 = vld [vmem:[%s4 + $0x10] sm:$0xff]
    %v131 = vld [vmem:[%s4 + $0x18] sm:$0xff]
    %v132 = vld [vmem:[%s4 + $0x20] sm:$0xff]
    %v133 = vld [vmem:[%s4 + $0x28] sm:$0xff]
    %v134 = vld [vmem:[%s4 + $0x30] sm:$0xff]
    %v135 = vld [vmem:[%s4 + $0x38] sm:$0xff]
    %v136 = vld [vmem:[%s4 + $0x40] sm:$0xff]
    %v137 = vld [vmem:[%s4 + $0x48] sm:$0xff]
    %v138 = vld [vmem:[%s4 + $0x50] sm:$0xff]
    %v139 = vld [vmem:[%s4 + $0x58] sm:$0xff]
    %v140 = vld [vmem:[%s4 + $0x60] sm:$0xff]
    %v141 = vld [vmem:[%s4 + $0x68] sm:$0xff]
    %v142 = vld [vmem:[%s4 + $0x70] sm:$0xff]
    %v143 = vld [vmem:[%s4 + $0x78] sm:$0xff]
    %v144 = vld [vmem:[%s4 + $0x80] sm:$0xff]
    %v145 = vld [vmem:[%s4 + $0x88] sm:$0xff]
    %v146 = vld [vmem:[%s4 + $0x90] sm:$0xff]
    %v147 = vld [vmem:[%s4 + $0x98] sm:$0xff]
    %v148 = vld [vmem:[%s4 + $0xa0] sm:$0xff]
    %v149 = vld [vmem:[%s4 + $0xa8] sm:$0xff]
    %v150 = vld [vmem:[%s4 + $0xb0] sm:$0xff]
    %v151 = vld [vmem:[%s4 + $0xb8] sm:$0xff]
    %v152 = vld [vmem:[%s5] sm:$0x3]
    %v154 = vlaneseq
    %v155 = vshrl.u32 %v154, 7
    %v156 = vsub.s32 0, %v155
    %v157 = vrot.slane %v152, %v156
    %v158 = vlaneseq
    %v159 = vshrl.u32 %v158, 7
    %v160 = vsub.s32 1, %v159
    %v161 = vrot.slane %v152, %v160
    %vm164 = vcmask 785408
    %v166 = vsel %vm164, %v127, 0
    %168 = vmatprep.subr.mxu0 %v129
    %169 = vmatpush1.msra.mxu0 %v128
    %170 = vmatprep.subr.mxu0 %v131
    %171 = vmatpush1.msra.mxu0 %v130
    %172 = vmatprep.subr.mxu0 %v133
    %173 = vmatpush1.msra.mxu0 %v132
    %174 = vmatprep.subr.mxu0 %v135
    %175 = vmatpush1.msra.mxu0 %v134
    %176 = vmatprep.subr.mxu0 %v137
    %177 = vmatpush1.msra.mxu0 %v136
    %178 = vmatprep.subr.mxu0 %v139
    %179 = vmatpush1.msra.mxu0 %v138
    %180 = vmatprep.subr.mxu0 %v141
    %181 = vmatpush1.msra.mxu0 %v140
    %182 = vmatprep.subr.mxu0 %v143
    %183 = vmatpush1.msra.mxu0 %v142
    %184 = vmatprep.subr.mxu0 %v145
    %185 = vmatpush1.msra.mxu0 %v144
    %186 = vmatprep.subr.mxu0 %v147
    %187 = vmatpush1.msra.mxu0 %v146
    %188 = vmatprep.subr.mxu0 %v149
    %189 = vmatpush1.msra.mxu0 %v148
    %190 = vmatprep.subr.mxu0 %v151
    %191 = vmatpush1.msra.mxu0 %v150
    %192 = vmatprep.subr.mxu0 0.0
    %193 = vmatpush1.msra.mxu0 0.0
    %194 = vmatprep.subr.mxu0 0.0
    %195 = vmatpush1.msra.mxu0 0.0
    %196 = vmatprep.subr.mxu0 0.0
    %197 = vmatpush1.msra.mxu0 0.0
    %198 = vmatprep.subr.mxu0 0.0
    %199 = vmatpush1.msra.mxu0 0.0
    %200 = vmatprep.subr.mxu0 0.0
    %201 = vmatpush1.msra.mxu0 0.0
    %202 = vmatprep.subr.mxu0 0.0
    %203 = vmatpush1.msra.mxu0 0.0
    %204 = vmatprep.subr.mxu0 0.0
    %205 = vmatpush1.msra.mxu0 0.0
    %206 = vmatprep.subr.mxu0 0.0
    %207 = vmatpush1.msra.mxu0 0.0
    %208 = vmatprep.subr.mxu0 0.0
    %209 = vmatpush1.msra.mxu0 0.0
    %210 = vmatprep.subr.mxu0 0.0
    %211 = vmatpush1.msra.mxu0 0.0
    %212 = vmatprep.subr.mxu0 0.0
    %213 = vmatpush1.msra.mxu0 0.0
    %214 = vmatprep.subr.mxu0 0.0
    %215 = vmatpush1.msra.mxu0 0.0
    %216 = vmatprep.subr.mxu0 0.0
    %217 = vmatpush1.msra.mxu0 0.0
    %218 = vmatprep.subr.mxu0 0.0
    %219 = vmatpush1.msra.mxu0 0.0
    %220 = vmatprep.subr.mxu0 0.0
    %221 = vmatpush1.msra.mxu0 0.0
    %222 = vmatprep.subr.mxu0 0.0
    %223 = vmatpush1.msra.mxu0 0.0
    %224 = vmatprep.subr.mxu0 0.0
    %225 = vmatpush1.msra.mxu0 0.0
    %226 = vmatprep.subr.mxu0 0.0
    %227 = vmatpush1.msra.mxu0 0.0
    %228 = vmatprep.subr.mxu0 0.0
    %229 = vmatpush1.msra.mxu0 0.0
    %230 = vmatprep.subr.mxu0 0.0
    %231 = vmatpush1.msra.mxu0 0.0
    %232 = vmatprep.mubr.f32.mxu0 0.0
    %233 = vmatmul.mubr.f32.gmra.mrb[0].mxu0 %v166
    %v234 = vpop.f32.mrb[0].mxu0
    %v235 = vadd.f32 %v157, %v234
    %v236 = vpop.f32.mrb[0].mxu0
    %v237 = vadd.f32 %v161, %v236
    %238 = vdwg.mxu0
    %v239 = vld [vmem:[%s1] sm:$0xff]
    %v240 = vld [vmem:[%s6] sm:$0x1]
    %v241 = vtanh.pop %v235
    %v243 = vlaneseq
    %v244 = vshrl.u32 %v243, 7
    %v245 = vsub.s32 0, %v244
    %v246 = vrot.slane %v240, %v245
    %248 = vrot.lane.b32.xlu0 %v246, 32
    %v249 = vpop.permute.xlu0 %248
    %v251 = vmul.f32 %v241, %v249
    %253 = vrot.lane.b32.xlu0 %v251, 96
    %v254 = vpop.permute.xlu0 %253
    %vm256 = vcmask 130048
    %v257 = vsel %vm256, %v254, 0.0
    %258 = vadd.xlane.f32.xlu0 %v257
    %v259 = vpop.xlane.xlu0 %258
    %v260 = vadd.f32 %v259, %v239
    %261 = vrot.lane.b32.xlu0 %v246, 80
    %v262 = vpop.permute.xlu0 %261
    %v264 = vmul.f32 %v241, %v262
    %266 = vrot.lane.b32.xlu0 %v264, 48
    %v267 = vpop.permute.xlu0 %266
    %v269 = vsel %vm256, %v267, 0.0
    %270 = vadd.xlane.f32.xlu0 %v269
    %v271 = vpop.xlane.xlu0 %270
    %v272 = vadd.f32 %v271, %v239
    %v273 = vtanh.pop %v237
    %v274 = vmul.f32 %v273, %v246
    %v275 = vsel %vm256, %v274, 0.0
    %276 = vadd.xlane.f32.xlu0 %v275
    %v277 = vpop.xlane.xlu0 %276
    %v278 = vadd.f32 %v277, %v239
    %280 = vrot.lane.b32.xlu0 %v272, 127
    %v281 = vpop.permute.xlu0 %280
    %v283 = vmax.f32 %v260, %v281
    %285 = vrot.lane.b32.xlu0 %v278, 126
    %v286 = vpop.permute.xlu0 %285
    %v288 = vmax.f32 %v283, %v286
    %v289 = vsub.f32 %v260, %v288
    %v290 = vmul.f32 %v289, 1.442695
    %v291 = vpow.pop %v290
    %293 = vrot.lane.b32.xlu0 %v288, 1
    %v294 = vpop.permute.xlu0 %293
    %v296 = vsub.f32 %v272, %v294
    %v297 = vmul.f32 %v296, 1.442695
    %v298 = vpow.pop %v297
    %299 = vrot.lane.b32.xlu0 %v288, 2
    %v300 = vpop.permute.xlu0 %299
    %v302 = vsub.f32 %v278, %v300
    %v303 = vmul.f32 %v302, 1.442695
    %v304 = vpow.pop %v303
    %306 = vrot.lane.b32.xlu0 %v298, 127
    %v307 = vpop.permute.xlu0 %306
    %v309 = vadd.f32 %v291, %v307
    %311 = vrot.lane.b32.xlu0 %v304, 126
    %v312 = vpop.permute.xlu0 %311
    %v314 = vadd.f32 %v309, %v312
    %v315 = vrcp.pop %v314
    %v316 = vmul.f32 %v291, %v315
    %318 = vset.pattern.permute.xlu0 0
    %319 = vperm.xlu0 %318, %v316
    %v320 = vpop.permute.xlu0 %319
    %v322 = vmul.f32 %v320, %v235
    %324 = vrot.lane.b32.xlu0 %v315, 1
    %v325 = vpop.permute.xlu0 %324
    %v327 = vmul.f32 %v298, %v325
    %329 = vset.pattern.permute.xlu0 1
    %330 = vperm.xlu0 %329, %v327
    %v331 = vpop.permute.xlu0 %330
    %v333 = vmul.f32 %v331, %v235
    %335 = vrot.lane.b32.xlu0 %v333, 80
    %v336 = vpop.permute.xlu0 %335
    %v338 = vadd.f32 %v322, %v336
    %339 = vrot.lane.b32.xlu0 %v315, 2
    %v340 = vpop.permute.xlu0 %339
    %v342 = vmul.f32 %v304, %v340
    %344 = vset.pattern.permute.xlu0 2
    %345 = vperm.xlu0 %344, %v342
    %v346 = vpop.permute.xlu0 %345
    %v348 = vmul.f32 %v346, %v235
    %350 = vrot.lane.b32.xlu0 %v348, 32
    %v351 = vpop.permute.xlu0 %350
    %v353 = vadd.f32 %v338, %v351
    %v354 = vld [vmem:[%s7] sm:$0xff]
    %v355 = vld [vmem:[%s7 + $0x8] sm:$0xff]
    %v356 = vld [vmem:[%s7 + $0x10] sm:$0xff]
    %v357 = vld [vmem:[%s7 + $0x18] sm:$0xff]
    %v358 = vld [vmem:[%s8] sm:$0x1]
    %v360 = vlaneseq
    %v361 = vshrl.u32 %v360, 7
    %v362 = vsub.s32 0, %v361
    %v363 = vrot.slane %v358, %v362
    %vm365 = vcmask 261120
    %v367 = vsel %vm365, %v353, 0
    %369 = vmatprep.subr.mxu0 0.0
    %370 = vmatpush1.msra.mxu0 %v354
    %371 = vmatprep.subr.mxu0 0.0
    %372 = vmatpush1.msra.mxu0 %v355
    %373 = vmatprep.subr.mxu0 0.0
    %374 = vmatpush1.msra.mxu0 %v356
    %375 = vmatprep.subr.mxu0 0.0
    %376 = vmatpush1.msra.mxu0 %v357
    %377 = vmatprep.subr.mxu0 0.0
    %378 = vmatpush1.msra.mxu0 0.0
    %379 = vmatprep.subr.mxu0 0.0
    %380 = vmatpush1.msra.mxu0 0.0
    %381 = vmatprep.subr.mxu0 0.0
    %382 = vmatpush1.msra.mxu0 0.0
    %383 = vmatprep.subr.mxu0 0.0
    %384 = vmatpush1.msra.mxu0 0.0
    %385 = vmatprep.subr.mxu0 0.0
    %386 = vmatpush1.msra.mxu0 0.0
    %387 = vmatprep.subr.mxu0 0.0
    %388 = vmatpush1.msra.mxu0 0.0
    %389 = vmatprep.subr.mxu0 0.0
    %390 = vmatpush1.msra.mxu0 0.0
    %391 = vmatprep.subr.mxu0 0.0
    %392 = vmatpush1.msra.mxu0 0.0
    %393 = vmatprep.subr.mxu0 0.0
    %394 = vmatpush1.msra.mxu0 0.0
    %395 = vmatprep.subr.mxu0 0.0
    %396 = vmatpush1.msra.mxu0 0.0
    %397 = vmatprep.subr.mxu0 0.0
    %398 = vmatpush1.msra.mxu0 0.0
    %399 = vmatprep.subr.mxu0 0.0
    %400 = vmatpush1.msra.mxu0 0.0
    %401 = vmatprep.subr.mxu0 0.0
    %402 = vmatpush1.msra.mxu0 0.0
    %403 = vmatprep.subr.mxu0 0.0
    %404 = vmatpush1.msra.mxu0 0.0
    %405 = vmatprep.subr.mxu0 0.0
    %406 = vmatpush1.msra.mxu0 0.0
    %407 = vmatprep.subr.mxu0 0.0
    %408 = vmatpush1.msra.mxu0 0.0
    %409 = vmatprep.subr.mxu0 0.0
    %410 = vmatpush1.msra.mxu0 0.0
    %411 = vmatprep.subr.mxu0 0.0
    %412 = vmatpush1.msra.mxu0 0.0
    %413 = vmatprep.subr.mxu0 0.0
    %414 = vmatpush1.msra.mxu0 0.0
    %415 = vmatprep.subr.mxu0 0.0
    %416 = vmatpush1.msra.mxu0 0.0
    %417 = vmatprep.subr.mxu0 0.0
    %418 = vmatpush1.msra.mxu0 0.0
    %419 = vmatprep.subr.mxu0 0.0
    %420 = vmatpush1.msra.mxu0 0.0
    %421 = vmatprep.subr.mxu0 0.0
    %422 = vmatpush1.msra.mxu0 0.0
    %423 = vmatprep.subr.mxu0 0.0
    %424 = vmatpush1.msra.mxu0 0.0
    %425 = vmatprep.subr.mxu0 0.0
    %426 = vmatpush1.msra.mxu0 0.0
    %427 = vmatprep.subr.mxu0 0.0
    %428 = vmatpush1.msra.mxu0 0.0
    %429 = vmatprep.subr.mxu0 0.0
    %430 = vmatpush1.msra.mxu0 0.0
    %431 = vmatprep.subr.mxu0 0.0
    %432 = vmatpush1.msra.mxu0 0.0
    %433 = vmatprep.mubr.f32.mxu0 0.0
    %434 = vmatmul.mubr.f32.gmra.mrb[0].mxu0 %v367
    %v435 = vpop.f32.mrb[0].mxu0
    %v436 = vadd.f32 %v363, %v435
    %v437 = vpop.f32.mrb[0].mxu0
    %438 = vdwg.mxu0
    %439 = vst [vmem:[#allocation2] sm:$0xff] %v436
    // Predicated region
    $region38: #{tpu_custom_call.1} parent=1 // pred_check
      _
    $region39: #{tpu_custom_call.1} parent=1 // pred_check_branch
      %441 = sbr.rel (0) target = $region41
    $region40: #{tpu_custom_call.1} parent=1 // pred_region
      %s443 = ssub.s32 128, 128
      %444 = vsyncadd [#allocation3], %s443
      %s446 = sshll.u32 [#allocation2], 4
      %s447 = int_to_ptr.vmem [resolvable:$true] %s446
      %449 = dma.vmem_to_hbm [thread:$0]  %s447, 128, %s9, [#allocation3]
    $region41: #{tpu_custom_call.1} parent=1 // pred_fallthru
      _
    // Predicated region
    $region42: #{tpu_custom_call.1} parent=1 // pred_check
      _
    $region43: #{tpu_custom_call.1} parent=1 // pred_check_branch
      %451 = sbr.rel (0) target = $region45
    $region44: #{tpu_custom_call.1} parent=1 // pred_region
      %452 = dma.done [#allocation3], 128
    $region45: #{tpu_custom_call.1} parent=1 // pred_fallthru
      _
    %453 = vsyncpa [#allocation3], 1

</llo_original>
